<compile_context>
chip_gen: v7x
topology: tpu7x:2x2x1
jax: 0.10.0
libtpu: 0.0.40
codegen_flags: <defaults>
</compile_context>

<pallas_src>
import jax
import jax.numpy as jnp
from jax.experimental import pallas as pl
from jax.experimental.pallas import tpu as pltpu


# Fits under v7x's 64 MiB physical VMEM while lifting v5e/v6e's 16/32 MiB scoped
# defaults; the default tiles below use ~16 MiB of buffers.
_DEFAULT_VMEM_LIMIT = 48 * 1024 * 1024
_MIN_PALLAS_BATCH = 1024


def _round_up(n, m):
    return ((n + m - 1) // m) * m


def _choose_row_tile(nrows, target):
    """Sublane-aligned row tile: as large as `target`, but keep >=4 grid steps for
    big inputs so megacore ("parallel") sharding and pipelining have work to overlap."""
    tile = min(target, _round_up(nrows, 8))
    if nrows > 4096:
        tile = min(tile, _round_up(pl.cdiv(nrows, 4), 8))
    return max(8, (tile // 8) * 8)


# ----------------------------------------------------------------------------- kernels
def _packed_linear_kernel(x_ref, w_ref, b_ref, o_ref):
    # x_ref: (tile, 128) VMEM -- `pack` logical rows per lane-dense physical row.
    # w_ref: (128, pack) VMEM block-diagonal weight (grid-invariant, stays resident).
    # b_ref: (1,) SMEM scalar bias.     o_ref: (tile, pack) VMEM.
    # One narrow MXU matmul computes all `pack` per-row dot products of each physical
    # row; the MXU (idle for a GEMV otherwise) absorbs the reduction -> DMA-bound.
    acc = jnp.dot(x_ref[...], w_ref[...], preferred_element_type=jnp.float32)
    o_ref[...] = (acc + b_ref[0]).astype(o_ref.dtype)


def _rowwise_linear_kernel(x_ref, w_ref, b_ref, o_ref):
    # Fallback for feature widths that do not divide 128: VPU multiply + cross-lane
    # reduce per row (full f32).  x_ref: (tile, K), w_ref: (1, K), o_ref: (tile, 1).
    acc = jnp.sum(x_ref[...] * w_ref[...], axis=1, keepdims=True)
    o_ref[...] = (acc + b_ref[0]).astype(o_ref.dtype)


# ---------------------------------------------------------------------------- wrappers
def _block_diag_weight(weight, pack):
    # (1, K) -> (pack*K, pack) with W[g*K + j, g] = weight[0, j]
    k = weight.shape[1]
    w_rep = jnp.tile(weight.reshape(-1), pack)                        # (pack*K,)
    sel = jnp.repeat(jnp.eye(pack, dtype=weight.dtype), k, axis=0)    # (pack*K, pack)
    return sel * w_rep[:, None]


def _linear_pallas_packed(x, weight, bias, *, block_m, vmem_limit_bytes):
    m, k = x.shape
    pack = 128 // k
    rows = m // pack
    xp = x.reshape(rows, 128)               # zero-copy: logical rows are contiguous
    wblk = _block_diag_weight(weight, pack)  # (128, pack)

    # ~4 double-buffered (tile,128)-f32 buffers (in + lane-padded out) ~ 2048*tile B;
    # keep comfortably inside the scoped-VMEM limit.
    tile_cap = max(8, (vmem_limit_bytes // (3 * 2048)) // 8 * 8)
    tile = _choose_row_tile(rows, min(max(8, block_m // pack), tile_cap))

    out = pl.pallas_call(
        _packed_linear_kernel,
        out_shape=jax.ShapeDtypeStruct((rows, pack), x.dtype),
        grid=(pl.cdiv(rows, tile),),
        in_specs=[
            # x: streamed over the batch, double-buffered; ragged final block is fine
            # (garbage rows only feed output rows that are dropped as out-of-bounds).
            pl.BlockSpec((tile, 128), lambda i: (i, 0)),
            # weight: one block, revisited every step -> stays resident in VMEM.
            pl.BlockSpec((128, pack), lambda i: (0, 0)),
            # bias: scalar in SMEM.
            pl.BlockSpec(memory_space=pltpu.MemorySpace.SMEM),
        ],
        out_specs=pl.BlockSpec((tile, pack), lambda i: (i, 0)),
        compiler_params=pltpu.CompilerParams(
            dimension_semantics=("parallel",),   # shard batch tiles across v7x TCs
            vmem_limit_bytes=vmem_limit_bytes,
        ),
        cost_estimate=pl.CostEstimate(
            flops=2 * m * k,
            transcendentals=0,
            bytes_accessed=4 * (m * k + 128 * pack + 1 + m),
        ),
    )(xp, wblk, bias)
    # zero-copy: row-major (rows, pack) flatten is exactly the logical row order.
    return out.reshape(m, 1)


def _linear_pallas_rowwise(x, weight, bias, *, block_m, vmem_limit_bytes):
    m, k = x.shape
    # (tile, K) pads to a multiple of 128 lanes in VMEM; keep each buffer <= ~4 MiB so
    # double-buffered input + output stay well inside the limit.
    lanes = _round_up(k, 128)
    cap = max(8, (4 * 1024 * 1024 // (4 * lanes)) // 8 * 8)
    tile = _choose_row_tile(m, min(block_m, cap))

    out = pl.pallas_call(
        _rowwise_linear_kernel,
        out_shape=jax.ShapeDtypeStruct((m, 1), x.dtype),
        grid=(pl.cdiv(m, tile),),
        in_specs=[
            pl.BlockSpec((tile, k), lambda i: (i, 0)),
            pl.BlockSpec((1, k), lambda i: (0, 0)),
            pl.BlockSpec(memory_space=pltpu.MemorySpace.SMEM),
        ],
        out_specs=pl.BlockSpec((tile, 1), lambda i: (i, 0)),
        compiler_params=pltpu.CompilerParams(
            dimension_semantics=("parallel",),
            vmem_limit_bytes=vmem_limit_bytes,
        ),
        cost_estimate=pl.CostEstimate(
            flops=2 * m * k,
            transcendentals=0,
            bytes_accessed=4 * (m * k + k + 1 + m),
        ),
    )(x, weight, bias)
    return out


def linear_forward(x, weight, bias, *, block_m=32768,
                   min_batch_for_pallas=_MIN_PALLAS_BATCH,
                   vmem_limit_bytes=_DEFAULT_VMEM_LIMIT):
    """Pallas equivalent of nn.Linear(in_features, 1).forward(x).

    x: (M, K) f32, weight: (1, K) f32, bias: (1,) f32  ->  (M, 1) f32.
    """
    m, k = x.shape
    assert weight.shape == (1, k), weight.shape
    assert bias.shape == (1,), bias.shape

    if m < min_batch_for_pallas:
        # A pallas_call dispatch (~1 us) dwarfs 2*M*K flops at tiny batch sizes;
        # plain XLA (a fused multiply + reduce) is strictly faster here.
        return x @ weight.T + bias

    if k <= 128 and 128 % k == 0 and m % (128 // k) == 0:
        return _linear_pallas_packed(x, weight, bias, block_m=block_m,
                                     vmem_limit_bytes=vmem_limit_bytes)
    # TODO(synk): feature widths that don't divide 128 keep the lane-sparse row-wise
    # kernel; packing them would need a strided lane gather or an extra HBM pass.
    return _linear_pallas_rowwise(x, weight, bias, block_m=block_m,
                                  vmem_limit_bytes=vmem_limit_bytes)


# ------------------------------------------------------------------------------- tests
def _bf16_exact(a):
    # Round test inputs to bf16-representable f32 values: products are then exact in
    # f32 no matter how many bf16 MXU passes the compiler uses, which keeps the
    # correctness check tight (~1e-7) instead of precision-policy dependent.
    return a.astype(jnp.bfloat16).astype(jnp.float32)


if __name__ == "__main__":
    input_params = 32                       # module: LinearModel(input_params=32)
    key = jax.random.PRNGKey(0)
    kx, kw, kb, kx2, kx3, kw3 = jax.random.split(key, 6)

    bound = 1.0 / (input_params ** 0.5)     # nn.Linear's U(-1/sqrt(K), 1/sqrt(K)) init
    weight = _bf16_exact(jax.random.uniform(
        kw, (1, input_params), minval=-bound, maxval=bound, dtype=jnp.float32))
    bias = _bf16_exact(jax.random.uniform(
        kb, (1,), minval=-bound, maxval=bound, dtype=jnp.float32))

    def check(x, w, b, out):
        ref = x @ w.T + b
        assert out.shape == ref.shape, (out.shape, ref.shape)
        assert bool(jnp.allclose(out, ref, atol=1e-5, rtol=1e-5))

    # 1) Module-sized input (batch=2): tiny batch takes the plain-XLA fast path.
    x_small = _bf16_exact(jax.random.normal(kx, (2, input_params), dtype=jnp.float32))
    out_small = jax.block_until_ready(linear_forward(x_small, weight, bias))
    check(x_small, weight, bias, out_small)

    # 2) Packed Pallas kernel: multi-step grid with a ragged final tile
    #    (2500 rows -> 625 packed rows, 128-row tiles -> 5 grid steps).
    x_big = _bf16_exact(jax.random.normal(kx2, (2500, input_params), dtype=jnp.float32))
    out_big = jax.block_until_ready(linear_forward(x_big, weight, bias, block_m=512))
    check(x_big, weight, bias, out_big)

    # 3) Row-wise Pallas fallback (feature width 48 does not divide 128), 4 grid steps.
    k3 = 48
    bound3 = 1.0 / (k3 ** 0.5)
    w3 = _bf16_exact(jax.random.uniform(kw3, (1, k3), minval=-bound3, maxval=bound3,
                                        dtype=jnp.float32))
    x3 = _bf16_exact(jax.random.normal(kx3, (2048, k3), dtype=jnp.float32))
    out3 = jax.block_until_ready(linear_forward(x3, w3, bias, block_m=512))
    check(x3, w3, bias, out3)

    print("KERNEL_OK")
</pallas_src>

<mosaic_0001>
module attributes {stable_mosaic.version = 11 : i64} {
  func.func @_packed_linear_kernel(%arg0: i32, %arg1: memref<128x128xf32, #tpu.memory_space<vmem>>, %arg2: memref<128x4xf32, #tpu.memory_space<vmem>>, %arg3: memref<1xf32, #tpu.memory_space<smem>>, %arg4: memref<128x4xf32, #tpu.memory_space<vmem>>) attributes {dimension_semantics = [#tpu.dimension_semantics<parallel>], iteration_bounds = array<i64: 5>, scalar_prefetch = 0 : i64, scratch_operands = 0 : i64, tpu.core_type = #tpu.core_type<tc>, window_params = [{transform_indices = @transform_0, window_bounds = array<i64: 128, 128>}, {pipeline_mode = #tpu.pipeline_mode<synchronous>, transform_indices = @transform_1, window_bounds = array<i64: 128, 4>}, {transform_indices = @transform_2, window_bounds = array<i64: 1>}, {transform_indices = @transform_3, window_bounds = array<i64: 128, 4>}]} {
    %c0 = arith.constant 0 : index
    %c0_0 = arith.constant 0 : index
    %0 = vector.load %arg1[%c0, %c0_0] : memref<128x128xf32, #tpu.memory_space<vmem>>, vector<128x128xf32>
    %c0_1 = arith.constant 0 : index
    %c0_2 = arith.constant 0 : index
    %1 = vector.load %arg2[%c0_1, %c0_2] : memref<128x4xf32, #tpu.memory_space<vmem>>, vector<128x4xf32>
    %cst = arith.constant dense<0.000000e+00> : vector<128x4xf32>
    %2 = tpu.matmul %0, %1, %cst {dimension_numbers = #tpu.dot_dimension_numbers<[1], [0], [0], [1], [0, 0, 1, 1], [], []>} : vector<128x128xf32>, vector<128x4xf32>, vector<128x4xf32> -> vector<128x4xf32>
    %c0_3 = arith.constant 0 : index
    %3 = memref.load %arg3[%c0_3] : memref<1xf32, #tpu.memory_space<smem>>
    %4 = vector.broadcast %3 : f32 to vector<128x4xf32>
    %5 = arith.addf %2, %4 : vector<128x4xf32>
    %c0_4 = arith.constant 0 : index
    %c0_5 = arith.constant 0 : index
    %6 = vector.load %arg4[%c0_4, %c0_5] : memref<128x4xf32, #tpu.memory_space<vmem>>, vector<128x4xf32>
    tpu.vector_store %arg4[%c0_4, %c0_5], %5 {strides = array<i32>} : memref<128x4xf32, #tpu.memory_space<vmem>>, vector<128x4xf32>,
    return
  }
  func.func @transform_0(%arg0: i32) -> (i32, i32) {
    %c0_i32 = arith.constant 0 : i32
    %c0_i32_0 = arith.constant 0 : i32
    return %arg0, %c0_i32 : i32, i32
  }
  func.func @transform_1(%arg0: i32) -> (i32, i32) {
    %c0_i32 = arith.constant 0 : i32
    %c0_i32_0 = arith.constant 0 : i32
    %c0_i32_1 = arith.constant 0 : i32
    return %c0_i32, %c0_i32_0 : i32, i32
  }
  func.func @transform_2(%arg0: i32) -> i32 {
    %c0_i32 = arith.constant 0 : i32
    %c0_i32_0 = arith.constant 0 : i32
    return %c0_i32 : i32
  }
  func.func @transform_3(%arg0: i32) -> (i32, i32) {
    %c0_i32 = arith.constant 0 : i32
    %c0_i32_0 = arith.constant 0 : i32
    return %arg0, %c0_i32 : i32, i32
  }
}

</mosaic_0001>

<llo_original>
// kernel: tpu_custom_call.1
$region0: #{tpu_custom_call.1}
  #allocation0 [shape = 'u32[]', space=smem, size = 0x4, offset = 0x4, fixed_abs, tag = 'smem constant byte address 0x4 - core index']
  #allocation1 [shape = 'u32[144,128]{1,0:T(1,128)}', space=vmem, size = 0x12000, scoped, tag = 'internal scratch']
  #allocation2 [shape = 'f32[1]{0:T(128)S(6)}', space=smem, size = 0x200, scoped, tag = 'scoped memory for tpu_custom_call.1']
  %s0 = inlined_call_operand.hbm [shape: f32[625,128], index: 0, kind: input, shape index: {}]
  %s1 = inlined_call_operand.vmem [shape: f32[128,4], index: 1, kind: input, shape index: {}]
  %s2 = inlined_call_operand.<no memory space> [shape: f32[1], index: 2, kind: input, shape index: {}]
  %s3 = inlined_call_operand.vmem [shape: f32[625,4], index: 3, kind: output, shape index: {}]
  %s4 = sld [smem:[#allocation0]]
  $region97: #{tpu_custom_call.1} parent=0
    _
  %s6 = ssub.s32 1, %s4
  %s7 = scalar_select 0, %s6, %s4
  %8 = sst [smem:[#allocation2]] %s2
  $region1: #{tpu_custom_call.1} parent=0
    #allocation3 [shape = 'u8[131072]{0}', space=vmem, size = 0x20000, scoped, tag = 'input window, operand 0']
    #allocation4 [shape = 's32[2]{0}', space=sflag, size = 0x8, scoped, tag = 'scoped memory for tpu_custom_call.1']
    #allocation5 [shape = 'u8[131072]{0}', space=vmem, size = 0x20000, scoped, tag = 'output window, operand 0']
    %9 = vsyncpa [#allocation4], 0
    %s10 = scalar_lea.sflag [#allocation4], 1
    %11 = vsyncpa %s10, 0
    loop: start=0, step=1, limit=7
    $region2: #{tpu_custom_call.1} parent=1 // loop_pre_header
      _
    $region3: #{tpu_custom_call.1} parent=1 // loop_header
      %s13 = sphi 0, %s17
      %p14 = scmp.ge.s32.totalorder %s13, 7
      %s23 = sphi 0, %s25
      %s26 = sphi 0, %s23
      %s27 = sphi 0, %s26
      %s43 = sphi 0, %s27
      %s47 = sphi 0, %s47
      %s49 = sphi 0, %s47
      %s50 = sphi 0, %s49
      %s64 = sphi 0, %s50
      %s68 = sphi 0, %s68
      %s70 = sphi 0, %s68
      %s71 = sphi 0, %s70
      %s85 = sphi 0, %s71
      %s91 = sphi 0, %s93
      %s94 = sphi 0, %s91
      %s95 = sphi 0, %s94
      %s111 = sphi 0, %s95
    $region4: #{tpu_custom_call.1} parent=1 // loop_header_branch
      %16 = sbr.rel (%p14) target = $region8
    $region5: #{tpu_custom_call.1} parent=1 // loop_body
      %s18 = ssub.s32 %s13, 1
      %s19 = ssub.s32 %s13, 2
      %s20 = sadd.s32 %s13, 1
      %s21 = ssub.s32 %s13, %s20
      %p22 = scmp.eq.s32.totalorder %s21, 0
      %s24 = sadd.s32 %s23, 1
      %s25 = scalar_select %p22, %s23, %s24
      %p28 = pneg %p22
      %p29 = scmp.eq.s32.totalorder %s13, 4
      %p30 = por %p28, %p29
      %p31 = scmp.ne.s32.totalorder %s23, %s26
      %p32 = scmp.eq.s32.totalorder %s13, 0
      %p33 = por %p31, %p32
      %p34 = scmp.ne.s32.totalorder %s23, %s26
      %p35 = scmp.eq.s32.totalorder %s18, 4
      %p36 = por %p34, %p35
      %p37 = scmp.ne.s32.totalorder %s26, %s27
      %p38 = scmp.eq.s32.totalorder %s18, 0
      %p39 = por %p37, %p38
      %p40 = scmp.ne.s32.totalorder %s26, %s27
      %p41 = scmp.eq.s32.totalorder %s19, 4
      %p42 = por %p40, %p41
      %p44 = scmp.ne.s32.totalorder %s27, %s43
      %p45 = scmp.eq.s32.totalorder %s19, 0
      %p46 = por %p44, %p45
      %s48 = sadd.s32 %s47, 1
      %p51 = scmp.eq.s32.totalorder %s13, 4
      %p52 = scmp.ne.s32.totalorder %s47, %s49
      %p53 = scmp.eq.s32.totalorder %s13, 0
      %p54 = por %p52, %p53
      %p55 = scmp.ne.s32.totalorder %s47, %s49
      %p56 = scmp.eq.s32.totalorder %s18, 4
      %p57 = por %p55, %p56
      %p58 = scmp.ne.s32.totalorder %s49, %s50
      %p59 = scmp.eq.s32.totalorder %s18, 0
      %p60 = por %p58, %p59
      %p61 = scmp.ne.s32.totalorder %s49, %s50
      %p62 = scmp.eq.s32.totalorder %s19, 4
      %p63 = por %p61, %p62
      %p65 = scmp.ne.s32.totalorder %s50, %s64
      %p66 = scmp.eq.s32.totalorder %s19, 0
      %p67 = por %p65, %p66
      %s69 = sadd.s32 %s68, 1
      %p72 = scmp.eq.s32.totalorder %s13, 4
      %p73 = scmp.ne.s32.totalorder %s68, %s70
      %p74 = scmp.eq.s32.totalorder %s13, 0
      %p75 = por %p73, %p74
      %p76 = scmp.ne.s32.totalorder %s68, %s70
      %p77 = scmp.eq.s32.totalorder %s18, 4
      %p78 = por %p76, %p77
      %p79 = scmp.ne.s32.totalorder %s70, %s71
      %p80 = scmp.eq.s32.totalorder %s18, 0
      %p81 = por %p79, %p80
      %p82 = scmp.ne.s32.totalorder %s70, %s71
      %p83 = scmp.eq.s32.totalorder %s19, 4
      %p84 = por %p82, %p83
      %p86 = scmp.ne.s32.totalorder %s71, %s85
      %p87 = scmp.eq.s32.totalorder %s19, 0
      %p88 = por %p86, %p87
      %s89 = ssub.s32 %s13, %s20
      %p90 = scmp.eq.s32.totalorder %s89, 0
      %s92 = sadd.s32 %s91, 1
      %s93 = scalar_select %p90, %s91, %s92
      %p96 = pneg %p90
      %p97 = scmp.eq.s32.totalorder %s13, 4
      %p98 = por %p96, %p97
      %p99 = scmp.ne.s32.totalorder %s91, %s94
      %p100 = scmp.eq.s32.totalorder %s13, 0
      %p101 = por %p99, %p100
      %p102 = scmp.ne.s32.totalorder %s91, %s94
      %p103 = scmp.eq.s32.totalorder %s18, 4
      %p104 = por %p102, %p103
      %p105 = scmp.ne.s32.totalorder %s94, %s95
      %p106 = scmp.eq.s32.totalorder %s18, 0
      %p107 = por %p105, %p106
      %p108 = scmp.ne.s32.totalorder %s94, %s95
      %p109 = scmp.eq.s32.totalorder %s19, 4
      %p110 = por %p108, %p109
      %p112 = scmp.ne.s32.totalorder %s95, %s111
      %p113 = scmp.eq.s32.totalorder %s19, 0
      %p114 = por %p112, %p113
      %p115 = scmp.le.s32.totalorder 1, %s13
      %p116 = scmp.lt.s32.totalorder %s13, 6
      %p117 = pnand %p115, %p116
      %p118 = pneg %p117
      // Predicated region
      $region9: #{tpu_custom_call.1} parent=5 // pred_check
        _
      $region10: #{tpu_custom_call.1} parent=5 // pred_check_branch
        %120 = sbr.rel (%p117) target = $region12
      $region11: #{tpu_custom_call.1} parent=5 // pred_region
        %s121 = ssub.s32 %s13, 1
        // Predicated region
        $region13: #{tpu_custom_call.1} parent=11 // pred_check
          %p122 = pneg %p60
        $region14: #{tpu_custom_call.1} parent=11 // pred_check_branch
          %124 = sbr.rel (%p122) target = $region16
        $region15: #{tpu_custom_call.1} parent=11 // pred_region
          _
        $region16: #{tpu_custom_call.1} parent=11 // pred_fallthru
          _
        // Predicated region
        $region17: #{tpu_custom_call.1} parent=11 // pred_check
          %p125 = pneg %p81
        $region18: #{tpu_custom_call.1} parent=11 // pred_check_branch
          %127 = sbr.rel (%p125) target = $region20
        $region19: #{tpu_custom_call.1} parent=11 // pred_region
          _
        $region20: #{tpu_custom_call.1} parent=11 // pred_fallthru
          _
      $region12: #{tpu_custom_call.1} parent=5 // pred_fallthru
        _
      %p128 = scmp.lt.s32.totalorder %s13, 5
      // Predicated region
      $region21: #{tpu_custom_call.1} parent=5 // pred_check
        %p129 = pneg %p128
      $region22: #{tpu_custom_call.1} parent=5 // pred_check_branch
        %131 = sbr.rel (%p129) target = $region24
      $region23: #{tpu_custom_call.1} parent=5 // pred_region
        // Predicated region
        $region25: #{tpu_custom_call.1} parent=23 // pred_check
          %p132 = pneg %p33
        $region26: #{tpu_custom_call.1} parent=23 // pred_check_branch
          %134 = sbr.rel (%p132) target = $region28
        $region27: #{tpu_custom_call.1} parent=23 // pred_region
          %s135 = sand.u32 %s23, 1
          %s136 = scalar_lea.sflag [#allocation4], %s135
          %s137 = sand.u32 %s23, 1
          %s138 = smul.addr %s137, 128
          %s139 = scalar_lea.vmem [#allocation3], %s138
          %s140 = smul.u32 16, %s13
          %s141 = ssub.s32 79, %s140
          %p142 = scmp.lt.s32.totalorder %s141, 16
          %s143 = scalar_select %p142, %s141, 16
          %s144 = smul.u32 128, %s143
          %s146 = ssub.s32 2048, %s144
          %147 = vsyncadd %s136, %s146
          %p148 = scmp.ne.s32.totalorder 0, %s144
          %s149 = smul.addr %s140, 128
          %s150 = scalar_lea.hbm %s0, %s149
          %s151 = smul.u32 8, %s143
          %s152 = sshll.u32 %s139, 4
          %s153 = int_to_ptr.vmem [resolvable:$true] %s152
          %s154 = sshll.u32 %s151, 4
          %158 = dma.hbm_to_vmem [thread:$0]  (%p148), %s150, %s154, %s153, %s136, 128, 128, 8
        $region28: #{tpu_custom_call.1} parent=23 // pred_fallthru
          _
      $region24: #{tpu_custom_call.1} parent=5 // pred_fallthru
        _
      %p159 = scmp.le.s32.totalorder 1, %s13
      %p160 = scmp.lt.s32.totalorder %s13, 6
      %p161 = pnand %p159, %p160
      %p162 = pneg %p161
      // Predicated region
      $region29: #{tpu_custom_call.1} parent=5 // pred_check
        _
      $region30: #{tpu_custom_call.1} parent=5 // pred_check_branch
        %164 = sbr.rel (%p161) target = $region32
      $region31: #{tpu_custom_call.1} parent=5 // pred_region
        %s165 = ssub.s32 %s13, 1
        %s166 = sand.u32 %s26, 1
        %s167 = scalar_lea.sflag [#allocation4], %s166
        %s168 = sand.u32 %s26, 1
        %s169 = smul.addr %s168, 128
        %s170 = scalar_lea.vmem [#allocation3], %s169
        // Predicated region
        $region33: #{tpu_custom_call.1} parent=31 // pred_check
          %p171 = pneg %p39
        $region34: #{tpu_custom_call.1} parent=31 // pred_check_branch
          %173 = sbr.rel (%p171) target = $region36
        $region35: #{tpu_custom_call.1} parent=31 // pred_region
          %174 = dma.done %s167, 2048
        $region36: #{tpu_custom_call.1} parent=31 // pred_fallthru
          _
        %s175 = sand.u32 %s26, 1
        %s176 = scalar_lea.sflag [#allocation4], %s175
        %s177 = sand.u32 %s26, 1
        %s178 = smul.addr %s177, 128
        %s179 = scalar_lea.vmem [#allocation3], %s178
        %p180 = pneg %p39
        %p181 = pneg %p36
        %p182 = pneg %p60
        %p183 = pneg %p57
        %p184 = pneg %p81
        %p185 = pneg %p78
        %p186 = pneg %p107
        %p187 = pneg %p104
        %s188 = sand.u32 %s94, 1
        %s189 = sand.u32 %s94, 1
        %s190 = smul.addr %s189, 128
        %s191 = scalar_lea.vmem [#allocation5], %s190
        %s192 = smul.u32 16, %s18
        %s193 = ssub.s32 79, %s192
        %p194 = scmp.lt.s32.totalorder %s193, 16
        %s195 = scalar_select %p194, %s193, 16
        %s196 = smul.u32 128, %s195
        %s197 = smul.u32 16, %s18
        %s198 = ssub.s32 79, %s197
        %p199 = scmp.lt.s32.totalorder %s198, 16
        %s200 = scalar_select %p199, %s198, 16
        %s201 = smul.u32 128, %s200
        %v202 = vld [vmem:[%s170] sm:$0xff]
        %v203 = vld [vmem:[%s170 + $0x8] sm:$0xff]
        %v204 = vld [vmem:[%s170 + $0x10] sm:$0xff]
        %v205 = vld [vmem:[%s170 + $0x18] sm:$0xff]
        %v206 = vld [vmem:[%s170 + $0x20] sm:$0xff]
        %v207 = vld [vmem:[%s170 + $0x28] sm:$0xff]
        %v208 = vld [vmem:[%s170 + $0x30] sm:$0xff]
        %v209 = vld [vmem:[%s170 + $0x38] sm:$0xff]
        %v210 = vld [vmem:[%s170 + $0x40] sm:$0xff]
        %v211 = vld [vmem:[%s170 + $0x48] sm:$0xff]
        %v212 = vld [vmem:[%s170 + $0x50] sm:$0xff]
        %v213 = vld [vmem:[%s170 + $0x58] sm:$0xff]
        %v214 = vld [vmem:[%s170 + $0x60] sm:$0xff]
        %v215 = vld [vmem:[%s170 + $0x68] sm:$0xff]
        %v216 = vld [vmem:[%s170 + $0x70] sm:$0xff]
        %v217 = vld [vmem:[%s170 + $0x78] sm:$0xff]
        %v218 = vld [vmem:[%s1] sm:$0xff]
        %v219 = vld [vmem:[%s1 + $0x8] sm:$0xff]
        %v220 = vld [vmem:[%s1 + $0x10] sm:$0xff]
        %v221 = vld [vmem:[%s1 + $0x18] sm:$0xff]
        %v222 = vld [vmem:[%s1 + $0x20] sm:$0xff]
        %v223 = vld [vmem:[%s1 + $0x28] sm:$0xff]
        %v224 = vld [vmem:[%s1 + $0x30] sm:$0xff]
        %v225 = vld [vmem:[%s1 + $0x38] sm:$0xff]
        %v226 = vld [vmem:[%s1 + $0x40] sm:$0xff]
        %v227 = vld [vmem:[%s1 + $0x48] sm:$0xff]
        %v228 = vld [vmem:[%s1 + $0x50] sm:$0xff]
        %v229 = vld [vmem:[%s1 + $0x58] sm:$0xff]
        %v230 = vld [vmem:[%s1 + $0x60] sm:$0xff]
        %v231 = vld [vmem:[%s1 + $0x68] sm:$0xff]
        %v232 = vld [vmem:[%s1 + $0x70] sm:$0xff]
        %v233 = vld [vmem:[%s1 + $0x78] sm:$0xff]
        %s234 = sld [smem:[#allocation2]]
        %v235 = vstv %s234
        %236 = vmatprep.subr.mxu0 0.0
        %237 = vmatpush1.msra.mxu0 %v218
        %238 = vmatprep.subr.mxu0 0.0
        %239 = vmatpush1.msra.mxu0 %v219
        %240 = vmatprep.subr.mxu0 0.0
        %241 = vmatpush1.msra.mxu0 %v220
        %242 = vmatprep.subr.mxu0 0.0
        %243 = vmatpush1.msra.mxu0 %v221
        %244 = vmatprep.subr.mxu0 0.0
        %245 = vmatpush1.msra.mxu0 %v222
        %246 = vmatprep.subr.mxu0 0.0
        %247 = vmatpush1.msra.mxu0 %v223
        %248 = vmatprep.subr.mxu0 0.0
        %249 = vmatpush1.msra.mxu0 %v224
        %250 = vmatprep.subr.mxu0 0.0
        %251 = vmatpush1.msra.mxu0 %v225
        %252 = vmatprep.subr.mxu0 0.0
        %253 = vmatpush1.msra.mxu0 %v226
        %254 = vmatprep.subr.mxu0 0.0
        %255 = vmatpush1.msra.mxu0 %v227
        %256 = vmatprep.subr.mxu0 0.0
        %257 = vmatpush1.msra.mxu0 %v228
        %258 = vmatprep.subr.mxu0 0.0
        %259 = vmatpush1.msra.mxu0 %v229
        %260 = vmatprep.subr.mxu0 0.0
        %261 = vmatpush1.msra.mxu0 %v230
        %262 = vmatprep.subr.mxu0 0.0
        %263 = vmatpush1.msra.mxu0 %v231
        %264 = vmatprep.subr.mxu0 0.0
        %265 = vmatpush1.msra.mxu0 %v232
        %266 = vmatprep.subr.mxu0 0.0
        %267 = vmatpush1.msra.mxu0 %v233
        %268 = vmatprep.subr.mxu0 0.0
        %269 = vmatpush1.msra.mxu0 0.0
        %270 = vmatprep.subr.mxu0 0.0
        %271 = vmatpush1.msra.mxu0 0.0
        %272 = vmatprep.subr.mxu0 0.0
        %273 = vmatpush1.msra.mxu0 0.0
        %274 = vmatprep.subr.mxu0 0.0
        %275 = vmatpush1.msra.mxu0 0.0
        %276 = vmatprep.subr.mxu0 0.0
        %277 = vmatpush1.msra.mxu0 0.0
        %278 = vmatprep.subr.mxu0 0.0
        %279 = vmatpush1.msra.mxu0 0.0
        %280 = vmatprep.subr.mxu0 0.0
        %281 = vmatpush1.msra.mxu0 0.0
        %282 = vmatprep.subr.mxu0 0.0
        %283 = vmatpush1.msra.mxu0 0.0
        %284 = vmatprep.subr.mxu0 0.0
        %285 = vmatpush1.msra.mxu0 0.0
        %286 = vmatprep.subr.mxu0 0.0
        %287 = vmatpush1.msra.mxu0 0.0
        %288 = vmatprep.subr.mxu0 0.0
        %289 = vmatpush1.msra.mxu0 0.0
        %290 = vmatprep.subr.mxu0 0.0
        %291 = vmatpush1.msra.mxu0 0.0
        %292 = vmatprep.subr.mxu0 0.0
        %293 = vmatpush1.msra.mxu0 0.0
        %294 = vmatprep.subr.mxu0 0.0
        %295 = vmatpush1.msra.mxu0 0.0
        %296 = vmatprep.subr.mxu0 0.0
        %297 = vmatpush1.msra.mxu0 0.0
        %298 = vmatprep.subr.mxu0 0.0
        %299 = vmatpush1.msra.mxu0 0.0
        %300 = vmatprep.mubr.f32.mxu0 0.0
        %301 = vmatmul.mubr.f32.gmra.mrb[0].mxu0 %v202
        %v302 = vpop.f32.mrb[0].mxu0
        %v303 = vadd.f32 %v235, %v302
        %v304 = vpop.f32.mrb[0].mxu0
        %305 = vmatprep.mubr.f32.mxu0 0.0
        %306 = vmatmul.mubr.f32.gmra.mrb[0].mxu0 %v203
        %v307 = vpop.f32.mrb[0].mxu0
        %v308 = vadd.f32 %v235, %v307
        %v309 = vpop.f32.mrb[0].mxu0
        %310 = vmatprep.mubr.f32.mxu0 0.0
        %311 = vmatmul.mubr.f32.gmra.mrb[0].mxu0 %v204
        %v312 = vpop.f32.mrb[0].mxu0
        %v313 = vadd.f32 %v235, %v312
        %v314 = vpop.f32.mrb[0].mxu0
        %315 = vmatprep.mubr.f32.mxu0 0.0
        %316 = vmatmul.mubr.f32.gmra.mrb[0].mxu0 %v205
        %v317 = vpop.f32.mrb[0].mxu0
        %v318 = vadd.f32 %v235, %v317
        %v319 = vpop.f32.mrb[0].mxu0
        %320 = vmatprep.mubr.f32.mxu0 0.0
        %321 = vmatmul.mubr.f32.gmra.mrb[0].mxu0 %v206
        %v322 = vpop.f32.mrb[0].mxu0
        %v323 = vadd.f32 %v235, %v322
        %v324 = vpop.f32.mrb[0].mxu0
        %325 = vmatprep.mubr.f32.mxu0 0.0
        %326 = vmatmul.mubr.f32.gmra.mrb[0].mxu0 %v207
        %v327 = vpop.f32.mrb[0].mxu0
        %v328 = vadd.f32 %v235, %v327
        %v329 = vpop.f32.mrb[0].mxu0
        %330 = vmatprep.mubr.f32.mxu0 0.0
        %331 = vmatmul.mubr.f32.gmra.mrb[0].mxu0 %v208
        %v332 = vpop.f32.mrb[0].mxu0
        %v333 = vadd.f32 %v235, %v332
        %v334 = vpop.f32.mrb[0].mxu0
        %335 = vmatprep.mubr.f32.mxu0 0.0
        %336 = vmatmul.mubr.f32.gmra.mrb[0].mxu0 %v209
        %v337 = vpop.f32.mrb[0].mxu0
        %v338 = vadd.f32 %v235, %v337
        %v339 = vpop.f32.mrb[0].mxu0
        %340 = vmatprep.mubr.f32.mxu0 0.0
        %341 = vmatmul.mubr.f32.gmra.mrb[0].mxu0 %v210
        %v342 = vpop.f32.mrb[0].mxu0
        %v343 = vadd.f32 %v235, %v342
        %v344 = vpop.f32.mrb[0].mxu0
        %345 = vmatprep.mubr.f32.mxu0 0.0
        %346 = vmatmul.mubr.f32.gmra.mrb[0].mxu0 %v211
        %v347 = vpop.f32.mrb[0].mxu0
        %v348 = vadd.f32 %v235, %v347
        %v349 = vpop.f32.mrb[0].mxu0
        %350 = vmatprep.mubr.f32.mxu0 0.0
        %351 = vmatmul.mubr.f32.gmra.mrb[0].mxu0 %v212
        %v352 = vpop.f32.mrb[0].mxu0
        %v353 = vadd.f32 %v235, %v352
        %v354 = vpop.f32.mrb[0].mxu0
        %355 = vmatprep.mubr.f32.mxu0 0.0
        %356 = vmatmul.mubr.f32.gmra.mrb[0].mxu0 %v213
        %v357 = vpop.f32.mrb[0].mxu0
        %v358 = vadd.f32 %v235, %v357
        %v359 = vpop.f32.mrb[0].mxu0
        %360 = vmatprep.mubr.f32.mxu0 0.0
        %361 = vmatmul.mubr.f32.gmra.mrb[0].mxu0 %v214
        %v362 = vpop.f32.mrb[0].mxu0
        %v363 = vadd.f32 %v235, %v362
        %v364 = vpop.f32.mrb[0].mxu0
        %365 = vmatprep.mubr.f32.mxu0 0.0
        %366 = vmatmul.mubr.f32.gmra.mrb[0].mxu0 %v215
        %v367 = vpop.f32.mrb[0].mxu0
        %v368 = vadd.f32 %v235, %v367
        %v369 = vpop.f32.mrb[0].mxu0
        %370 = vmatprep.mubr.f32.mxu0 0.0
        %371 = vmatmul.mubr.f32.gmra.mrb[0].mxu0 %v216
        %v372 = vpop.f32.mrb[0].mxu0
        %v373 = vadd.f32 %v235, %v372
        %v374 = vpop.f32.mrb[0].mxu0
        %375 = vmatprep.mubr.f32.mxu0 0.0
        %376 = vmatmul.mubr.f32.gmra.mrb[0].mxu0 %v217
        %v377 = vpop.f32.mrb[0].mxu0
        %v378 = vadd.f32 %v235, %v377
        %v379 = vpop.f32.mrb[0].mxu0
        %380 = vdwg.mxu0
        %vm381 = vcmask 31744
        %382 = vst.msk [vmem:[%s191] sm:$0xff] %vm381, %v303
        %383 = vst.msk [vmem:[%s191 + $0x8] sm:$0xff] %vm381, %v308
        %384 = vst.msk [vmem:[%s191 + $0x10] sm:$0xff] %vm381, %v313
        %385 = vst.msk [vmem:[%s191 + $0x18] sm:$0xff] %vm381, %v318
        %386 = vst.msk [vmem:[%s191 + $0x20] sm:$0xff] %vm381, %v323
        %387 = vst.msk [vmem:[%s191 + $0x28] sm:$0xff] %vm381, %v328
        %388 = vst.msk [vmem:[%s191 + $0x30] sm:$0xff] %vm381, %v333
        %389 = vst.msk [vmem:[%s191 + $0x38] sm:$0xff] %vm381, %v338
        %390 = vst.msk [vmem:[%s191 + $0x40] sm:$0xff] %vm381, %v343
        %391 = vst.msk [vmem:[%s191 + $0x48] sm:$0xff] %vm381, %v348
        %392 = vst.msk [vmem:[%s191 + $0x50] sm:$0xff] %vm381, %v353
        %393 = vst.msk [vmem:[%s191 + $0x58] sm:$0xff] %vm381, %v358
        %394 = vst.msk [vmem:[%s191 + $0x60] sm:$0xff] %vm381, %v363
        %395 = vst.msk [vmem:[%s191 + $0x68] sm:$0xff] %vm381, %v368
        %396 = vst.msk [vmem:[%s191 + $0x70] sm:$0xff] %vm381, %v373
        %397 = vst.msk [vmem:[%s191 + $0x78] sm:$0xff] %vm381, %v378
        %s398 = sand.u32 %s94, 1
        %s399 = sand.u32 %s94, 1
        %s400 = smul.addr %s399, 128
        %s401 = scalar_lea.vmem [#allocation5], %s400
        // Predicated region
        $region37: #{tpu_custom_call.1} parent=31 // pred_check
          %p402 = pneg %p104
        $region38: #{tpu_custom_call.1} parent=31 // pred_check_branch
          %404 = sbr.rel (%p402) target = $region40
        $region39: #{tpu_custom_call.1} parent=31 // pred_region
          %s405 = smul.u32 16, %s18
          %s406 = ssub.s32 79, %s405
          %p407 = scmp.lt.s32.totalorder %s406, 16
          %s408 = scalar_select %p407, %s406, 16
          %s409 = smul.u32 128, %s408
          %p410 = scmp.ne.s32.totalorder 0, %s409
          %s411 = smul.addr %s405, 8
          %s412 = scalar_lea.vmem %s3, %s411
          // Predicated region
          $region41: #{tpu_custom_call.1} parent=39 // pred_check
            %p413 = pneg %p410
          $region42: #{tpu_custom_call.1} parent=39 // pred_check_branch
            %415 = sbr.rel (%p413) target = $region44
          $region43: #{tpu_custom_call.1} parent=39 // pred_region
            // Predicated region
            $region45: #{tpu_custom_call.1} parent=43 // pred_check
              _
            $region46: #{tpu_custom_call.1} parent=43 // pred_check_branch
              %417 = sbr.rel (0) target = $region48
            $region47: #{tpu_custom_call.1} parent=43 // pred_region
              // Predicated region
              $region67: #{tpu_custom_call.1} parent=47 // pred_check
                _
              $region68: #{tpu_custom_call.1} parent=47 // pred_check_branch
                %496 = sbr.rel (0) target = $region70
              $region69: #{tpu_custom_call.1} parent=47 // pred_region
                %s497 = sshrl.u32 %s408, 4
                // While loop
                $region71: #{tpu_custom_call.1} parent=69 // loop_pre_header
                  _
                $region72: #{tpu_custom_call.1} parent=69 // loop_header
                  %s499 = sphi 0, %s501
                  %p500 = scmp.ge.s32.totalorder %s499, %s497
                  %s504 = sphi 0, %s541
                  %s505 = sphi %s401, %s544
                  %s506 = sphi %s412, %s545
                $region73: #{tpu_custom_call.1} parent=69 // loop_header_branch
                  %503 = sbr.rel (%p500) target = $region77
                $region74: #{tpu_custom_call.1} parent=69 // loop_body
                  %v507 = vld [vmem:[%s505] sm:$0xff]
                  %508 = vst [vmem:[%s506] sm:$0xff] %v507
                  %v509 = vld [vmem:[%s505 + $0x8] sm:$0xff]
                  %510 = vst [vmem:[%s506 + $0x8] sm:$0xff] %v509
                  %v511 = vld [vmem:[%s505 + $0x10] sm:$0xff]
                  %512 = vst [vmem:[%s506 + $0x10] sm:$0xff] %v511
                  %v513 = vld [vmem:[%s505 + $0x18] sm:$0xff]
                  %514 = vst [vmem:[%s506 + $0x18] sm:$0xff] %v513
                  %v515 = vld [vmem:[%s505 + $0x20] sm:$0xff]
                  %516 = vst [vmem:[%s506 + $0x20] sm:$0xff] %v515
                  %v517 = vld [vmem:[%s505 + $0x28] sm:$0xff]
                  %518 = vst [vmem:[%s506 + $0x28] sm:$0xff] %v517
                  %v519 = vld [vmem:[%s505 + $0x30] sm:$0xff]
                  %520 = vst [vmem:[%s506 + $0x30] sm:$0xff] %v519
                  %v521 = vld [vmem:[%s505 + $0x38] sm:$0xff]
                  %522 = vst [vmem:[%s506 + $0x38] sm:$0xff] %v521
                  %v523 = vld [vmem:[%s505 + $0x40] sm:$0xff]
                  %524 = vst [vmem:[%s506 + $0x40] sm:$0xff] %v523
                  %v525 = vld [vmem:[%s505 + $0x48] sm:$0xff]
                  %526 = vst [vmem:[%s506 + $0x48] sm:$0xff] %v525
                  %v527 = vld [vmem:[%s505 + $0x50] sm:$0xff]
                  %528 = vst [vmem:[%s506 + $0x50] sm:$0xff] %v527
                  %v529 = vld [vmem:[%s505 + $0x58] sm:$0xff]
                  %530 = vst [vmem:[%s506 + $0x58] sm:$0xff] %v529
                  %v531 = vld [vmem:[%s505 + $0x60] sm:$0xff]
                  %532 = vst [vmem:[%s506 + $0x60] sm:$0xff] %v531
                  %v533 = vld [vmem:[%s505 + $0x68] sm:$0xff]
                  %534 = vst [vmem:[%s506 + $0x68] sm:$0xff] %v533
                  %v535 = vld [vmem:[%s505 + $0x70] sm:$0xff]
                  %536 = vst [vmem:[%s506 + $0x70] sm:$0xff] %v535
                  %v537 = vld [vmem:[%s505 + $0x78] sm:$0xff]
                  %538 = vst [vmem:[%s506 + $0x78] sm:$0xff] %v537
                  %s539 = sadd.s32 1, %s504
                  %p540 = scmp.ge.s32.totalorder %s539, %s497
                  %s541 = scalar_select %p540, 0, %s539
                  %s542 = smul.u32 %s541, 128
                  %s543 = smul.u32 %s541, 128
                  %s544 = scalar_lea.vmem %s401, %s542 [#allocation5]
                  %s545 = scalar_lea.vmem %s412, %s543
                $region75: #{tpu_custom_call.1} parent=69 // loop_footer
                  %s501 = sadd.s32 %s499, 1
                $region76: #{tpu_custom_call.1} parent=69 // loop_footer_branch
                  %498 = sbr.rel target = $region72
                $region77: #{tpu_custom_call.1} parent=69 // loop_exit
                  _
                %s546 = sshrl.u32 %s408, 4
                %s547 = sand.u32 %s408, 15
                %s548 = smul.u32 %s546, 16
                %s549 = smul.u32 8, %s548
                %s550 = scalar_lea.vmem %s401, %s549 [#allocation5]
                %s551 = smul.u32 8, %s548
                %s552 = scalar_lea.vmem %s412, %s551
                // While loop
                $region78: #{tpu_custom_call.1} parent=69 // loop_pre_header
                  _
                $region79: #{tpu_custom_call.1} parent=69 // loop_header
                  %s554 = sphi 0, %s556
                  %p555 = scmp.ge.s32.totalorder %s554, %s547
                  %s559 = sphi 0, %s566
                  %s560 = sphi %s550, %s569
                  %s561 = sphi %s552, %s570
                $region80: #{tpu_custom_call.1} parent=69 // loop_header_branch
                  %558 = sbr.rel (%p555) target = $region84
                $region81: #{tpu_custom_call.1} parent=69 // loop_body
                  %v562 = vld [vmem:[%s560] sm:$0xff]
                  %563 = vst [vmem:[%s561] sm:$0xff] %v562
                  %s564 = sadd.s32 1, %s559
                  %p565 = scmp.ge.s32.totalorder %s564, %s547
                  %s566 = scalar_select %p565, 0, %s564
                  %s567 = smul.u32 %s566, 8
                  %s568 = smul.u32 %s566, 8
                  %s569 = scalar_lea.vmem %s550, %s567 [#allocation5]
                  %s570 = scalar_lea.vmem %s552, %s568
                $region82: #{tpu_custom_call.1} parent=69 // loop_footer
                  %s556 = sadd.s32 %s554, 1
                $region83: #{tpu_custom_call.1} parent=69 // loop_footer_branch
                  %553 = sbr.rel target = $region79
                $region84: #{tpu_custom_call.1} parent=69 // loop_exit
                  _
              $region70: #{tpu_custom_call.1} parent=47 // pred_fallthru
                _
              // Predicated region
              $region85: #{tpu_custom_call.1} parent=47 // pred_check
                _
              $region86: #{tpu_custom_call.1} parent=47 // pred_check_branch
                %572 = sbr.rel target = $region88
              $region87: #{tpu_custom_call.1} parent=47 // pred_region
                _
              $region88: #{tpu_custom_call.1} parent=47 // pred_fallthru
                _
            $region48: #{tpu_custom_call.1} parent=43 // pred_fallthru
              _
            // Predicated region
            $region49: #{tpu_custom_call.1} parent=43 // pred_check
              _
            $region50: #{tpu_custom_call.1} parent=43 // pred_check_branch
              %419 = sbr.rel target = $region52
            $region51: #{tpu_custom_call.1} parent=43 // pred_region
              %s421 = sshrl.u32 %s408, 4
              // While loop
              $region53: #{tpu_custom_call.1} parent=51 // loop_pre_header
                _
              $region54: #{tpu_custom_call.1} parent=51 // loop_header
                %s423 = sphi 0, %s425
                %p424 = scmp.ge.s32.totalorder %s423, %s421
                %s428 = sphi 0, %s465
                %s429 = sphi %s401, %s468
                %s430 = sphi %s412, %s469
              $region55: #{tpu_custom_call.1} parent=51 // loop_header_branch
                %427 = sbr.rel (%p424) target = $region59
              $region56: #{tpu_custom_call.1} parent=51 // loop_body
                %v431 = vld [vmem:[%s429] sm:$0xff]
                %432 = vst [vmem:[%s430] sm:$0xff] %v431
                %v433 = vld [vmem:[%s429 + $0x8] sm:$0xff]
                %434 = vst [vmem:[%s430 + $0x8] sm:$0xff] %v433
                %v435 = vld [vmem:[%s429 + $0x10] sm:$0xff]
                %436 = vst [vmem:[%s430 + $0x10] sm:$0xff] %v435
                %v437 = vld [vmem:[%s429 + $0x18] sm:$0xff]
                %438 = vst [vmem:[%s430 + $0x18] sm:$0xff] %v437
                %v439 = vld [vmem:[%s429 + $0x20] sm:$0xff]
                %440 = vst [vmem:[%s430 + $0x20] sm:$0xff] %v439
                %v441 = vld [vmem:[%s429 + $0x28] sm:$0xff]
                %442 = vst [vmem:[%s430 + $0x28] sm:$0xff] %v441
                %v443 = vld [vmem:[%s429 + $0x30] sm:$0xff]
                %444 = vst [vmem:[%s430 + $0x30] sm:$0xff] %v443
                %v445 = vld [vmem:[%s429 + $0x38] sm:$0xff]
                %446 = vst [vmem:[%s430 + $0x38] sm:$0xff] %v445
                %v447 = vld [vmem:[%s429 + $0x40] sm:$0xff]
                %448 = vst [vmem:[%s430 + $0x40] sm:$0xff] %v447
                %v449 = vld [vmem:[%s429 + $0x48] sm:$0xff]
                %450 = vst [vmem:[%s430 + $0x48] sm:$0xff] %v449
                %v451 = vld [vmem:[%s429 + $0x50] sm:$0xff]
                %452 = vst [vmem:[%s430 + $0x50] sm:$0xff] %v451
                %v453 = vld [vmem:[%s429 + $0x58] sm:$0xff]
                %454 = vst [vmem:[%s430 + $0x58] sm:$0xff] %v453
                %v455 = vld [vmem:[%s429 + $0x60] sm:$0xff]
                %456 = vst [vmem:[%s430 + $0x60] sm:$0xff] %v455
                %v457 = vld [vmem:[%s429 + $0x68] sm:$0xff]
                %458 = vst [vmem:[%s430 + $0x68] sm:$0xff] %v457
                %v459 = vld [vmem:[%s429 + $0x70] sm:$0xff]
                %460 = vst [vmem:[%s430 + $0x70] sm:$0xff] %v459
                %v461 = vld [vmem:[%s429 + $0x78] sm:$0xff]
                %462 = vst [vmem:[%s430 + $0x78] sm:$0xff] %v461
                %s463 = sadd.s32 1, %s428
                %p464 = scmp.ge.s32.totalorder %s463, %s421
                %s465 = scalar_select %p464, 0, %s463
                %s466 = smul.u32 %s465, 128
                %s467 = smul.u32 %s465, 128
                %s468 = scalar_lea.vmem %s401, %s466 [#allocation5]
                %s469 = scalar_lea.vmem %s412, %s467
              $region57: #{tpu_custom_call.1} parent=51 // loop_footer
                %s425 = sadd.s32 %s423, 1
              $region58: #{tpu_custom_call.1} parent=51 // loop_footer_branch
                %422 = sbr.rel target = $region54
              $region59: #{tpu_custom_call.1} parent=51 // loop_exit
                _
              %s470 = sshrl.u32 %s408, 4
              %s471 = sand.u32 %s408, 15
              %s472 = smul.u32 %s470, 16
              %s473 = smul.u32 8, %s472
              %s474 = scalar_lea.vmem %s401, %s473 [#allocation5]
              %s475 = smul.u32 8, %s472
              %s476 = scalar_lea.vmem %s412, %s475
              // While loop
              $region60: #{tpu_custom_call.1} parent=51 // loop_pre_header
                _
              $region61: #{tpu_custom_call.1} parent=51 // loop_header
                %s478 = sphi 0, %s480
                %p479 = scmp.ge.s32.totalorder %s478, %s471
                %s483 = sphi 0, %s490
                %s484 = sphi %s474, %s493
                %s485 = sphi %s476, %s494
              $region62: #{tpu_custom_call.1} parent=51 // loop_header_branch
                %482 = sbr.rel (%p479) target = $region66
              $region63: #{tpu_custom_call.1} parent=51 // loop_body
                %v486 = vld [vmem:[%s484] sm:$0xff]
                %487 = vst [vmem:[%s485] sm:$0xff] %v486
                %s488 = sadd.s32 1, %s483
                %p489 = scmp.ge.s32.totalorder %s488, %s471
                %s490 = scalar_select %p489, 0, %s488
                %s491 = smul.u32 %s490, 8
                %s492 = smul.u32 %s490, 8
                %s493 = scalar_lea.vmem %s474, %s491 [#allocation5]
                %s494 = scalar_lea.vmem %s476, %s492
              $region64: #{tpu_custom_call.1} parent=51 // loop_footer
                %s480 = sadd.s32 %s478, 1
              $region65: #{tpu_custom_call.1} parent=51 // loop_footer_branch
                %477 = sbr.rel target = $region61
              $region66: #{tpu_custom_call.1} parent=51 // loop_exit
                _
            $region52: #{tpu_custom_call.1} parent=43 // pred_fallthru
              _
          $region44: #{tpu_custom_call.1} parent=39 // pred_fallthru
            _
          %573 = vnop
        $region40: #{tpu_custom_call.1} parent=31 // pred_fallthru
          _
      $region32: #{tpu_custom_call.1} parent=5 // pred_fallthru
        _
      %p574 = scmp.le.s32.totalorder 2, %s13
      // Predicated region
      $region89: #{tpu_custom_call.1} parent=5 // pred_check
        %p575 = pneg %p574
      $region90: #{tpu_custom_call.1} parent=5 // pred_check_branch
        %577 = sbr.rel (%p575) target = $region92
      $region91: #{tpu_custom_call.1} parent=5 // pred_region
        %s578 = ssub.s32 %s13, 2
        // Predicated region
        $region93: #{tpu_custom_call.1} parent=91 // pred_check
          %p579 = pneg %p110
        $region94: #{tpu_custom_call.1} parent=91 // pred_check_branch
          %581 = sbr.rel (%p579) target = $region96
        $region95: #{tpu_custom_call.1} parent=91 // pred_region
          %s582 = sand.u32 %s95, 1
          %s583 = sand.u32 %s95, 1
          %s584 = smul.addr %s583, 128
          %s585 = scalar_lea.vmem [#allocation5], %s584
        $region96: #{tpu_custom_call.1} parent=91 // pred_fallthru
          _
      $region92: #{tpu_custom_call.1} parent=5 // pred_fallthru
        _
    $region6: #{tpu_custom_call.1} parent=1 // loop_footer
      %s17 = sadd.s32 1, %s13
    $region7: #{tpu_custom_call.1} parent=1 // loop_footer_branch
      %12 = sbr.rel target = $region3
    $region8: #{tpu_custom_call.1} parent=1 // loop_exit
      _
    %586 = vsyncpa [#allocation4], 1
    %s587 = scalar_lea.sflag [#allocation4], 1
    %588 = vsyncpa %s587, 1

</llo_original>
